<compile_context>
chip_gen: v5e
topology: v5e:2x2
jax: 0.10.0
libtpu: 0.0.40
codegen_flags: <defaults>
</compile_context>

<pallas_src>
import math

import numpy as np

import jax
import jax.numpy as jnp
from jax.experimental import pallas as pl
from jax.experimental.pallas import tpu as pltpu


def _round_up(x, m):
    return (x + m - 1) // m * m


def _pick_hidden_tile(hidden, max_tile, quantum=128):
    """Largest multiple of `quantum` <= max_tile that divides `hidden` exactly
    (falls back to full `hidden` if none exists). Exact division is required so
    no garbage hidden columns leak into the accumulator."""
    if hidden <= max_tile:
        return hidden
    t = (max_tile // quantum) * quantum
    while t >= quantum:
        if hidden % t == 0:
            return t
        t -= quantum
    return hidden


def _erf(x):
    # Abramowitz & Stegun 7.1.26 rational approximation (max abs error 1.5e-7).
    a1 = 0.254829592
    a2 = -0.284496736
    a3 = 1.421413741
    a4 = -1.453152027
    a5 = 1.061405429
    p = 0.3275911
    ax = jnp.abs(x)
    # Divide on the EUP (approx reciprocal): the ~12-op polynomial stays pure
    # VALU work; on v5e this erf can otherwise become the binding slot.
    t = pl.reciprocal(1.0 + p * ax, approx=True)
    poly = ((((a5 * t + a4) * t + a3) * t + a2) * t + a1) * t
    y = 1.0 - poly * jnp.exp(-ax * ax)
    return jnp.where(x >= 0, y, -y)


def _gelu_exact(x):
    # PyTorch F.gelu default: x * 0.5 * (1 + erf(x / sqrt(2)))
    return 0.5 * x * (1.0 + _erf(x * (1.0 / math.sqrt(2.0))))


def _ffn_kernel(x_ref, w1v_ref, w1g_ref, b1v_ref, b1g_ref, w2_ref, b2_ref,
                o_ref, acc_ref):
    # x_ref   : (tn, dim)  bf16 row tile (constant over k -> fetched once per row tile)
    # w1v_ref : (dim, tk)  bf16 value half of W1, hidden slab k
    # w1g_ref : (dim, tk)  bf16 gate  half of W1, hidden slab k
    # b1v_ref : (1, tk)    f32
    # b1g_ref : (1, tk)    f32
    # w2_ref  : (tk, dim)  bf16 hidden slab k of W2
    # b2_ref  : (1, dim)   f32 (constant)
    # o_ref   : (tn, dim)  output row tile (written at last k)
    # acc_ref : (tn, dim)  f32 accumulator scratch
    k = pl.program_id(1)

    @pl.when(k == 0)
    def _init():
        # Fold b2 into the accumulator init: one broadcast per row tile rather
        # than a broadcast-add every hidden step.
        acc_ref[...] = jnp.broadcast_to(b2_ref[...], acc_ref.shape)

    x = x_ref[...]

    # First projection on the MXU (bf16 in, f32 accumulate), split into the
    # value/gate halves of W1.
    val = jnp.dot(x, w1v_ref[...], preferred_element_type=jnp.float32) + b1v_ref[...]
    gate = jnp.dot(x, w1g_ref[...], preferred_element_type=jnp.float32) + b1g_ref[...]

    # GEGLU: chunk(2, -1) -> (value, gate); out = gelu(gate) * value.
    act = _gelu_exact(gate) * val
    # Dropout(p=0.0) elided (identity).

    # Second projection slab on the MXU, accumulated over hidden tiles.
    acc_ref[...] += jnp.dot(act.astype(jnp.bfloat16), w2_ref[...],
                            preferred_element_type=jnp.float32)

    @pl.when(k == pl.num_programs(1) - 1)
    def _finalize():
        o_ref[...] = acc_ref[...].astype(o_ref.dtype)


def feed_forward(x, w1, b1, w2, b2, *, row_tile=256, hidden_tile=512):
    """Fused Pallas FeedForward (GEGLU MLP).

    x:  (..., dim)
    w1: (dim, 2*hidden)  b1: (2*hidden,) or (1, 2*hidden)
    w2: (hidden, dim)    b2: (dim,)      or (1, dim)
    """
    orig_shape = x.shape
    dim = int(orig_shape[-1])
    two_h = int(w1.shape[-1])
    hidden = two_h // 2
    assert w2.shape == (hidden, dim)

    x2 = x.reshape(-1, dim)
    n = x2.shape[0]

    # Row tile (multiple of 8 sublanes). For small n the whole problem is one
    # block; for large n keep row_tile large to amortize weight re-streaming.
    tn = min(row_tile, _round_up(n, 8))

    # Hidden (reduction) tile: 512 keeps the double-buffered bf16 weight slabs
    # (2*dim*tk + tk*dim) under ~25 MiB even at dim=4096 -> fits v7x's 64 MiB.
    tk = _pick_hidden_tile(hidden, hidden_tile)
    n_k = hidden // tk

    # bf16 MXU inputs (native rate; halves weight DMA + VMEM footprint);
    # biases and accumulation stay f32.
    x_bf = x2.astype(jnp.bfloat16)
    w1v = w1[:, :hidden].astype(jnp.bfloat16)
    w1g = w1[:, hidden:].astype(jnp.bfloat16)
    b1f = b1.reshape(1, two_h).astype(jnp.float32)
    b1v = b1f[:, :hidden]
    b1g = b1f[:, hidden:]
    w2_bf = w2.astype(jnp.bfloat16)
    b2f = b2.reshape(1, dim).astype(jnp.float32)

    out_bytes = jnp.dtype(x.dtype).itemsize
    # Per-step VMEM estimate (double-buffered streamed operands + scratch),
    # 2x headroom for temporaries; clamp to [32 MiB, 64 MiB] (v7x physical).
    per_step = (
        2 * tn * dim * 2                # x tile (bf16)
        + 2 * (3 * dim * tk) * 2        # W1 halves + W2 slab (bf16)
        + 2 * (2 * tk + dim) * 4        # biases (f32)
        + 2 * tn * dim * out_bytes      # output tile
        + tn * dim * 4                  # f32 accumulator scratch
    )
    vmem_limit = int(min(max(2 * per_step, 32 * 1024 * 1024), 64 * 1024 * 1024))

    grid = (pl.cdiv(n, tn), n_k)  # (rows: parallel, hidden: reduction, last)

    out = pl.pallas_call(
        _ffn_kernel,
        out_shape=jax.ShapeDtypeStruct((n, dim), x.dtype),
        grid=grid,
        in_specs=[
            pl.BlockSpec((tn, dim), lambda i, k: (i, 0)),   # x rows (not re-DMA'd over k)
            pl.BlockSpec((dim, tk), lambda i, k: (0, k)),   # W1 value-half slab
            pl.BlockSpec((dim, tk), lambda i, k: (0, k)),   # W1 gate-half slab
            pl.BlockSpec((1, tk), lambda i, k: (0, k)),     # b1 value slab
            pl.BlockSpec((1, tk), lambda i, k: (0, k)),     # b1 gate slab
            pl.BlockSpec((tk, dim), lambda i, k: (k, 0)),   # W2 slab
            pl.BlockSpec((1, dim), lambda i, k: (0, 0)),    # b2 (constant)
        ],
        out_specs=pl.BlockSpec((tn, dim), lambda i, k: (i, 0)),
        scratch_shapes=[pltpu.VMEM((tn, dim), jnp.float32)],
        compiler_params=pltpu.CompilerParams(
            dimension_semantics=("parallel", "arbitrary"),
            vmem_limit_bytes=vmem_limit,
        ),
    )(x_bf, w1v, w1g, b1v, b1g, w2_bf, b2f)

    return out.reshape(orig_shape)


def _ffn_reference_f32(x2, w1, b1, w2, b2):
    """Exact module semantics (f32, HIGHEST precision)."""
    h = jnp.dot(x2, w1, precision=jax.lax.Precision.HIGHEST) + b1.reshape(1, -1)
    val, gate = jnp.split(h, 2, axis=-1)
    act = jax.nn.gelu(gate, approximate=False) * val
    return jnp.dot(act, w2, precision=jax.lax.Precision.HIGHEST) + b2.reshape(1, -1)


def _ffn_reference_bf16(x2, w1, b1, w2, b2):
    """Module semantics with the kernel's MXU policy (bf16 inputs, f32 acc)."""
    h = jnp.dot(x2.astype(jnp.bfloat16), w1.astype(jnp.bfloat16),
                preferred_element_type=jnp.float32) + b1.reshape(1, -1)
    val, gate = jnp.split(h, 2, axis=-1)
    act = jax.nn.gelu(gate, approximate=False) * val
    return jnp.dot(act.astype(jnp.bfloat16), w2.astype(jnp.bfloat16),
                   preferred_element_type=jnp.float32) + b2.reshape(1, -1)


if __name__ == "__main__":
    batch, seq, dim, mult = 2, 8, 32, 4
    hidden = dim * mult          # 128
    two_h = 2 * hidden           # 256

    key = jax.random.PRNGKey(0)
    kx, kw1, kb1, kw2, kb2 = jax.random.split(key, 5)

    x = jax.random.normal(kx, (batch, seq, dim), dtype=jnp.float32)

    # nn.Linear default init: U(-1/sqrt(fan_in), 1/sqrt(fan_in)).
    bound1 = 1.0 / math.sqrt(dim)
    w1 = jax.random.uniform(kw1, (dim, two_h), jnp.float32, -bound1, bound1)
    b1 = jax.random.uniform(kb1, (1, two_h), jnp.float32, -bound1, bound1)
    bound2 = 1.0 / math.sqrt(hidden)
    w2 = jax.random.uniform(kw2, (hidden, dim), jnp.float32, -bound2, bound2)
    b2 = jax.random.uniform(kb2, (1, dim), jnp.float32, -bound2, bound2)

    out = feed_forward(x, w1, b1, w2, b2)
    out = jax.block_until_ready(out)
    assert out.shape == (batch, seq, dim), out.shape

    x2 = x.reshape(-1, dim)
    ref_bf = np.asarray(_ffn_reference_bf16(x2, w1, b1, w2, b2)).reshape(batch, seq, dim)
    ref_f32 = np.asarray(_ffn_reference_f32(x2, w1, b1, w2, b2)).reshape(batch, seq, dim)
    out_np = np.asarray(out)

    # Tight check vs a reference that mirrors the kernel's bf16-MXU / f32-acc policy.
    assert np.allclose(out_np, ref_bf, rtol=5e-3, atol=5e-3), (
        "mismatch vs bf16-policy reference: max abs diff = %g"
        % float(np.max(np.abs(out_np - ref_bf))))
    # Loose sanity check vs the exact f32 module semantics (bf16 MXU rounding).
    assert np.allclose(out_np, ref_f32, rtol=3e-2, atol=3e-2), (
        "mismatch vs f32 reference: max abs diff = %g"
        % float(np.max(np.abs(out_np - ref_f32))))

    print("KERNEL_OK")
</pallas_src>

<mosaic_0001>
module attributes {stable_mosaic.version = 11 : i64} {
  func.func @_ffn_kernel(%arg0: i32, %arg1: i32, %arg2: memref<16x32xbf16, #tpu.memory_space<vmem>>, %arg3: memref<32x128xbf16, #tpu.memory_space<vmem>>, %arg4: memref<32x128xbf16, #tpu.memory_space<vmem>>, %arg5: memref<1x128xf32, #tpu.memory_space<vmem>>, %arg6: memref<1x128xf32, #tpu.memory_space<vmem>>, %arg7: memref<128x32xbf16, #tpu.memory_space<vmem>>, %arg8: memref<1x32xf32, #tpu.memory_space<vmem>>, %arg9: memref<16x32xf32, #tpu.memory_space<vmem>>, %arg10: memref<16x32xf32, #tpu.memory_space<vmem>>) attributes {dimension_semantics = [#tpu.dimension_semantics<parallel>, #tpu.dimension_semantics<arbitrary>], iteration_bounds = array<i64: 1, 1>, scalar_prefetch = 0 : i64, scratch_operands = 1 : i64, tpu.core_type = #tpu.core_type<tc>, window_params = [{transform_indices = @transform_0, window_bounds = array<i64: 16, 32>}, {transform_indices = @transform_1, window_bounds = array<i64: 32, 128>}, {transform_indices = @transform_2, window_bounds = array<i64: 32, 128>}, {transform_indices = @transform_3, window_bounds = array<i64: 1, 128>}, {transform_indices = @transform_4, window_bounds = array<i64: 1, 128>}, {transform_indices = @transform_5, window_bounds = array<i64: 128, 32>}, {pipeline_mode = #tpu.pipeline_mode<synchronous>, transform_indices = @transform_6, window_bounds = array<i64: 1, 32>}, {transform_indices = @transform_7, window_bounds = array<i64: 16, 32>}]} {
    %c0_i32 = arith.constant 0 : i32
    %0 = arith.cmpi eq, %arg1, %c0_i32 : i32
    %1 = arith.extui %0 : i1 to i32
    %c0_i32_0 = arith.constant 0 : i32
    %2 = arith.cmpi ne, %1, %c0_i32_0 : i32
    scf.if %2 {
      %c0_34 = arith.constant 0 : index
      %c0_35 = arith.constant 0 : index
      %63 = vector.load %arg8[%c0_34, %c0_35] : memref<1x32xf32, #tpu.memory_space<vmem>>, vector<1x32xf32>
      %64 = vector.shape_cast %63 : vector<1x32xf32> to vector<1x32xf32>
      %65 = vector.broadcast %64 : vector<1x32xf32> to vector<16x32xf32>
      %c0_36 = arith.constant 0 : index
      %c0_37 = arith.constant 0 : index
      %66 = vector.load %arg10[%c0_36, %c0_37] : memref<16x32xf32, #tpu.memory_space<vmem>>, vector<16x32xf32>
      tpu.vector_store %arg10[%c0_36, %c0_37], %65 {strides = array<i32>} : memref<16x32xf32, #tpu.memory_space<vmem>>, vector<16x32xf32>,
    } else {
    }
    %c0 = arith.constant 0 : index
    %c0_1 = arith.constant 0 : index
    %3 = vector.load %arg2[%c0, %c0_1] : memref<16x32xbf16, #tpu.memory_space<vmem>>, vector<16x32xbf16>
    %c0_2 = arith.constant 0 : index
    %c0_3 = arith.constant 0 : index
    %4 = vector.load %arg3[%c0_2, %c0_3] : memref<32x128xbf16, #tpu.memory_space<vmem>>, vector<32x128xbf16>
    %cst = arith.constant dense<0.000000e+00> : vector<16x128xf32>
    %5 = tpu.matmul %3, %4, %cst {dimension_numbers = #tpu.dot_dimension_numbers<[1], [0], [0], [1], [0, 0, 1, 1], [], []>} : vector<16x32xbf16>, vector<32x128xbf16>, vector<16x128xf32> -> vector<16x128xf32>
    %c0_4 = arith.constant 0 : index
    %c0_5 = arith.constant 0 : index
    %6 = vector.load %arg5[%c0_4, %c0_5] : memref<1x128xf32, #tpu.memory_space<vmem>>, vector<1x128xf32>
    %7 = vector.broadcast %6 : vector<1x128xf32> to vector<16x128xf32>
    %8 = arith.addf %5, %7 : vector<16x128xf32>
    %c0_6 = arith.constant 0 : index
    %c0_7 = arith.constant 0 : index
    %9 = vector.load %arg4[%c0_6, %c0_7] : memref<32x128xbf16, #tpu.memory_space<vmem>>, vector<32x128xbf16>
    %cst_8 = arith.constant dense<0.000000e+00> : vector<16x128xf32>
    %10 = tpu.matmul %3, %9, %cst_8 {dimension_numbers = #tpu.dot_dimension_numbers<[1], [0], [0], [1], [0, 0, 1, 1], [], []>} : vector<16x32xbf16>, vector<32x128xbf16>, vector<16x128xf32> -> vector<16x128xf32>
    %c0_9 = arith.constant 0 : index
    %c0_10 = arith.constant 0 : index
    %11 = vector.load %arg6[%c0_9, %c0_10] : memref<1x128xf32, #tpu.memory_space<vmem>>, vector<1x128xf32>
    %12 = vector.broadcast %11 : vector<1x128xf32> to vector<16x128xf32>
    %13 = arith.addf %10, %12 : vector<16x128xf32>
    %cst_11 = arith.constant 5.000000e-01 : f32
    %14 = vector.broadcast %cst_11 : f32 to vector<16x128xf32>
    %15 = arith.mulf %14, %13 : vector<16x128xf32>
    %cst_12 = arith.constant 0.707106769 : f32
    %16 = vector.broadcast %cst_12 : f32 to vector<16x128xf32>
    %17 = arith.mulf %13, %16 : vector<16x128xf32>
    %18 = math.absf %17 : vector<16x128xf32>
    %cst_13 = arith.constant 0.327591091 : f32
    %19 = vector.broadcast %cst_13 : f32 to vector<16x128xf32>
    %20 = arith.mulf %19, %18 : vector<16x128xf32>
    %cst_14 = arith.constant 1.000000e+00 : f32
    %21 = vector.broadcast %cst_14 : f32 to vector<16x128xf32>
    %22 = arith.addf %21, %20 : vector<16x128xf32>
    %23 = tpu.reciprocal %22 {approx = true} : vector<16x128xf32> -> vector<16x128xf32>
    %cst_15 = arith.constant 1.06140542 : f32
    %24 = vector.broadcast %cst_15 : f32 to vector<16x128xf32>
    %25 = arith.mulf %24, %23 : vector<16x128xf32>
    %cst_16 = arith.constant -1.45315206 : f32
    %26 = vector.broadcast %cst_16 : f32 to vector<16x128xf32>
    %27 = arith.addf %25, %26 : vector<16x128xf32>
    %28 = arith.mulf %27, %23 : vector<16x128xf32>
    %cst_17 = arith.constant 1.42141378 : f32
    %29 = vector.broadcast %cst_17 : f32 to vector<16x128xf32>
    %30 = arith.addf %28, %29 : vector<16x128xf32>
    %31 = arith.mulf %30, %23 : vector<16x128xf32>
    %cst_18 = arith.constant -0.284496725 : f32
    %32 = vector.broadcast %cst_18 : f32 to vector<16x128xf32>
    %33 = arith.addf %31, %32 : vector<16x128xf32>
    %34 = arith.mulf %33, %23 : vector<16x128xf32>
    %cst_19 = arith.constant 0.254829586 : f32
    %35 = vector.broadcast %cst_19 : f32 to vector<16x128xf32>
    %36 = arith.addf %34, %35 : vector<16x128xf32>
    %37 = arith.mulf %36, %23 : vector<16x128xf32>
    %cst_20 = arith.constant 0.000000e+00 : f32
    %38 = vector.broadcast %cst_20 : f32 to vector<16x128xf32>
    %39 = arith.subf %38, %18 : vector<16x128xf32>
    %40 = arith.mulf %39, %18 : vector<16x128xf32>
    %41 = math.exp %40 : vector<16x128xf32>
    %42 = arith.mulf %37, %41 : vector<16x128xf32>
    %cst_21 = arith.constant 1.000000e+00 : f32
    %43 = vector.broadcast %cst_21 : f32 to vector<16x128xf32>
    %44 = arith.subf %43, %42 : vector<16x128xf32>
    %cst_22 = arith.constant 0.000000e+00 : f32
    %45 = vector.broadcast %cst_22 : f32 to vector<16x128xf32>
    %46 = arith.cmpf oge, %17, %45 : vector<16x128xf32>
    %cst_23 = arith.constant 0.000000e+00 : f32
    %47 = vector.broadcast %cst_23 : f32 to vector<16x128xf32>
    %48 = arith.subf %47, %44 : vector<16x128xf32>
    %49 = arith.select %46, %44, %48 : vector<16x128xi1>, vector<16x128xf32>
    %cst_24 = arith.constant 1.000000e+00 : f32
    %50 = vector.broadcast %cst_24 : f32 to vector<16x128xf32>
    %51 = arith.addf %50, %49 : vector<16x128xf32>
    %52 = arith.mulf %15, %51 : vector<16x128xf32>
    %53 = arith.mulf %52, %8 : vector<16x128xf32>
    %c0_25 = arith.constant 0 : index
    %c0_26 = arith.constant 0 : index
    %54 = vector.load %arg10[%c0_25, %c0_26] : memref<16x32xf32, #tpu.memory_space<vmem>>, vector<16x32xf32>
    %55 = arith.truncf %53 : vector<16x128xf32> to vector<16x128xbf16>
    %c0_27 = arith.constant 0 : index
    %c0_28 = arith.constant 0 : index
    %56 = vector.load %arg7[%c0_27, %c0_28] : memref<128x32xbf16, #tpu.memory_space<vmem>>, vector<128x32xbf16>
    %cst_29 = arith.constant dense<0.000000e+00> : vector<16x32xf32>
    %57 = tpu.matmul %55, %56, %cst_29 {dimension_numbers = #tpu.dot_dimension_numbers<[1], [0], [0], [1], [0, 0, 1, 1], [], []>} : vector<16x128xbf16>, vector<128x32xbf16>, vector<16x32xf32> -> vector<16x32xf32>
    %58 = arith.addf %54, %57 : vector<16x32xf32>
    %c0_30 = arith.constant 0 : index
    %c0_31 = arith.constant 0 : index
    %59 = vector.load %arg10[%c0_30, %c0_31] : memref<16x32xf32, #tpu.memory_space<vmem>>, vector<16x32xf32>
    tpu.vector_store %arg10[%c0_30, %c0_31], %58 {strides = array<i32>} : memref<16x32xf32, #tpu.memory_space<vmem>>, vector<16x32xf32>,
    %c0_i32_32 = arith.constant 0 : i32
    %60 = arith.cmpi eq, %arg1, %c0_i32_32 : i32
    %61 = arith.extui %60 : i1 to i32
    %c0_i32_33 = arith.constant 0 : i32
    %62 = arith.cmpi ne, %61, %c0_i32_33 : i32
    scf.if %62 {
      %c0_34 = arith.constant 0 : index
      %c0_35 = arith.constant 0 : index
      %63 = vector.load %arg10[%c0_34, %c0_35] : memref<16x32xf32, #tpu.memory_space<vmem>>, vector<16x32xf32>
      %c0_36 = arith.constant 0 : index
      %c0_37 = arith.constant 0 : index
      %64 = vector.load %arg9[%c0_36, %c0_37] : memref<16x32xf32, #tpu.memory_space<vmem>>, vector<16x32xf32>
      tpu.vector_store %arg9[%c0_36, %c0_37], %63 {strides = array<i32>} : memref<16x32xf32, #tpu.memory_space<vmem>>, vector<16x32xf32>,
    } else {
    }
    return
  }
  func.func @transform_0(%arg0: i32, %arg1: i32) -> (i32, i32) {
    %c0_i32 = arith.constant 0 : i32
    %c0_i32_0 = arith.constant 0 : i32
    return %arg0, %c0_i32 : i32, i32
  }
  func.func @transform_1(%arg0: i32, %arg1: i32) -> (i32, i32) {
    %c0_i32 = arith.constant 0 : i32
    %c0_i32_0 = arith.constant 0 : i32
    return %c0_i32, %arg1 : i32, i32
  }
  func.func @transform_2(%arg0: i32, %arg1: i32) -> (i32, i32) {
    %c0_i32 = arith.constant 0 : i32
    %c0_i32_0 = arith.constant 0 : i32
    return %c0_i32, %arg1 : i32, i32
  }
  func.func @transform_3(%arg0: i32, %arg1: i32) -> (i32, i32) {
    %c0_i32 = arith.constant 0 : i32
    %c0_i32_0 = arith.constant 0 : i32
    return %c0_i32, %arg1 : i32, i32
  }
  func.func @transform_4(%arg0: i32, %arg1: i32) -> (i32, i32) {
    %c0_i32 = arith.constant 0 : i32
    %c0_i32_0 = arith.constant 0 : i32
    return %c0_i32, %arg1 : i32, i32
  }
  func.func @transform_5(%arg0: i32, %arg1: i32) -> (i32, i32) {
    %c0_i32 = arith.constant 0 : i32
    %c0_i32_0 = arith.constant 0 : i32
    return %arg1, %c0_i32 : i32, i32
  }
  func.func @transform_6(%arg0: i32, %arg1: i32) -> (i32, i32) {
    %c0_i32 = arith.constant 0 : i32
    %c0_i32_0 = arith.constant 0 : i32
    %c0_i32_1 = arith.constant 0 : i32
    return %c0_i32, %c0_i32_0 : i32, i32
  }
  func.func @transform_7(%arg0: i32, %arg1: i32) -> (i32, i32) {
    %c0_i32 = arith.constant 0 : i32
    %c0_i32_0 = arith.constant 0 : i32
    return %arg0, %c0_i32 : i32, i32
  }
}

</mosaic_0001>

<llo_original>
// kernel: tpu_custom_call.1
$region0: #{tpu_custom_call.1}
  #allocation0 [shape = 'u32[]', space=smem, size = 0x4, offset = 0x4, fixed_abs, tag = 'smem constant byte address 0x4 - core index']
  #allocation1 [shape = 'u32[72,128]{1,0:T(1,128)}', space=vmem, size = 0x9000, scoped, tag = 'internal scratch']
  #allocation2 [shape = 'f32[16,32]{1,0:T(8,128)}', space=vmem, size = 0x2000, scoped, tag = 'scratch operand']
  %s0 = inlined_call_operand.vmem [shape: bf16[16,32], index: 0, kind: input, shape index: {}]
  %s1 = inlined_call_operand.vmem [shape: bf16[32,128], index: 1, kind: input, shape index: {}]
  %s2 = inlined_call_operand.vmem [shape: bf16[32,128], index: 2, kind: input, shape index: {}]
  %s3 = inlined_call_operand.vmem [shape: f32[1,128], index: 3, kind: input, shape index: {}]
  %s4 = inlined_call_operand.vmem [shape: f32[1,128], index: 4, kind: input, shape index: {}]
  %s5 = inlined_call_operand.vmem [shape: bf16[128,32], index: 5, kind: input, shape index: {}]
  %s6 = inlined_call_operand.vmem [shape: f32[1,32], index: 6, kind: input, shape index: {}]
  %s7 = inlined_call_operand.hbm [shape: f32[16,32], index: 7, kind: output, shape index: {}]
  %s8 = sld [smem:[#allocation0]]
  $region46: #{tpu_custom_call.1} parent=0
    _
  %s10 = ssub.s32 1, %s8
  %s11 = scalar_select 0, %s10, %s8
  $region1: #{tpu_custom_call.1} parent=0
    #allocation3 [shape = 'u8[8192]{0}', space=vmem, size = 0x2000, scoped, tag = 'output window, operand 0, single buffered']
    #allocation4 [shape = 's32[1]{0}', space=sflag, size = 0x4, scoped, tag = 'scoped memory for tpu_custom_call.1']
    %12 = vsyncpa [#allocation4], 0
    // Predicated region
    $region2: #{tpu_custom_call.1} parent=1 // pred_check
      _
    $region3: #{tpu_custom_call.1} parent=1 // pred_check_branch
      %14 = sbr.rel (0) target = $region5
    $region4: #{tpu_custom_call.1} parent=1 // pred_region
      _
    $region5: #{tpu_custom_call.1} parent=1 // pred_fallthru
      _
    // Predicated region
    $region6: #{tpu_custom_call.1} parent=1 // pred_check
      _
    $region7: #{tpu_custom_call.1} parent=1 // pred_check_branch
      %16 = sbr.rel (0) target = $region9
    $region8: #{tpu_custom_call.1} parent=1 // pred_region
      _
    $region9: #{tpu_custom_call.1} parent=1 // pred_fallthru
      _
    // Predicated region
    $region10: #{tpu_custom_call.1} parent=1 // pred_check
      _
    $region11: #{tpu_custom_call.1} parent=1 // pred_check_branch
      %18 = sbr.rel (0) target = $region13
    $region12: #{tpu_custom_call.1} parent=1 // pred_region
      _
    $region13: #{tpu_custom_call.1} parent=1 // pred_fallthru
      _
    // Predicated region
    $region14: #{tpu_custom_call.1} parent=1 // pred_check
      _
    $region15: #{tpu_custom_call.1} parent=1 // pred_check_branch
      %20 = sbr.rel (0) target = $region17
    $region16: #{tpu_custom_call.1} parent=1 // pred_region
      _
    $region17: #{tpu_custom_call.1} parent=1 // pred_fallthru
      _
    // Predicated region
    $region18: #{tpu_custom_call.1} parent=1 // pred_check
      _
    $region19: #{tpu_custom_call.1} parent=1 // pred_check_branch
      %22 = sbr.rel (0) target = $region21
    $region20: #{tpu_custom_call.1} parent=1 // pred_region
      _
    $region21: #{tpu_custom_call.1} parent=1 // pred_fallthru
      _
    // Predicated region
    $region22: #{tpu_custom_call.1} parent=1 // pred_check
      _
    $region23: #{tpu_custom_call.1} parent=1 // pred_check_branch
      %24 = sbr.rel (0) target = $region25
    $region24: #{tpu_custom_call.1} parent=1 // pred_region
      _
    $region25: #{tpu_custom_call.1} parent=1 // pred_fallthru
      _
    // Predicated region
    $region26: #{tpu_custom_call.1} parent=1 // pred_check
      _
    $region27: #{tpu_custom_call.1} parent=1 // pred_check_branch
      %26 = sbr.rel (0) target = $region29
    $region28: #{tpu_custom_call.1} parent=1 // pred_region
      _
    $region29: #{tpu_custom_call.1} parent=1 // pred_fallthru
      _
    %p28 = scmp.eq.s32.totalorder 0, 0
    // Predicated region
    $region30: #{tpu_custom_call.1} parent=1 // pred_check
      %p29 = pneg %p28
    $region31: #{tpu_custom_call.1} parent=1 // pred_check_branch
      %31 = sbr.rel (%p29) target = $region33
    $region32: #{tpu_custom_call.1} parent=1 // pred_region
      %v32 = vld [vmem:[%s6] sm:$0x1]
      %v34 = vperm.slane %v32, 0
      %vm36 = vcmask 261120
      %37 = vst.msk [vmem:[#allocation2] sm:$0xff] %vm36, %v34
      %38 = vst.msk [vmem:[#allocation2 + $0x8] sm:$0xff] %vm36, %v34
    $region33: #{tpu_custom_call.1} parent=1 // pred_fallthru
      _
    %v39 = vld [vmem:[%s0] sm:$0xf]
    %v40 = vld [vmem:[%s0 + $0x4] sm:$0xf]
    %v41 = vld [vmem:[%s1] sm:$0xf]
    %v42 = vld [vmem:[%s1 + $0x4] sm:$0xf]
    %v43 = vld [vmem:[%s1 + $0x8] sm:$0xf]
    %v44 = vld [vmem:[%s1 + $0xc] sm:$0xf]
    %v45 = vld [vmem:[%s3] sm:$0x1]
    %v47 = vperm.slane %v45, 0
    %v51 = vunpack.c.l.b16 %v39
    %v52 = vunpack.c.l.b16 %v40
    %v53 = vpack.c.b16 %v52, %v51
    %v58 = vunpack.c.l.b16 %v41
    %v59 = vunpack.c.l.b16 %v42
    %v60 = vunpack.c.l.b16 %v43
    %v61 = vunpack.c.l.b16 %v44
    %v62 = vpack.c.b16 %v59, %v58
    %v63 = vpack.c.b16 %v61, %v60
    %vm66 = vcmask 261120
    %v68 = vsel %vm66, %v53, 0
    %70 = vmatpush.bf16.msra.mxu0 0
    %71 = vmatpush.bf16.msra.mxu0 0
    %72 = vmatpush.bf16.msra.mxu0 0
    %73 = vmatpush.bf16.msra.mxu0 0
    %74 = vmatpush.bf16.msra.mxu0 0
    %75 = vmatpush.bf16.msra.mxu0 0
    %76 = vmatpush.bf16.msra.mxu0 %v63
    %77 = vmatpush.bf16.msra.mxu0 %v62
    %78 = vmatmul.bf16.gmra.mxu0 %v68
    %v79 = vpop.f32.mrf.mxu0
    %v80 = vadd.f32 %v47, %v79
    %v81 = vpop.f32.mrf.mxu0
    %v82 = vadd.f32 %v47, %v81
    %83 = vdwg.mxu0
    %v84 = vld [vmem:[%s2] sm:$0xf]
    %v85 = vld [vmem:[%s2 + $0x4] sm:$0xf]
    %v86 = vld [vmem:[%s2 + $0x8] sm:$0xf]
    %v87 = vld [vmem:[%s2 + $0xc] sm:$0xf]
    %v88 = vld [vmem:[%s4] sm:$0x1]
    %v90 = vperm.slane %v88, 0
    %v96 = vunpack.c.l.b16 %v84
    %v97 = vunpack.c.l.b16 %v85
    %v98 = vunpack.c.l.b16 %v86
    %v99 = vunpack.c.l.b16 %v87
    %v100 = vpack.c.b16 %v97, %v96
    %v101 = vpack.c.b16 %v99, %v98
    %104 = vmatpush.bf16.msra.mxu0 0
    %105 = vmatpush.bf16.msra.mxu0 0
    %106 = vmatpush.bf16.msra.mxu0 0
    %107 = vmatpush.bf16.msra.mxu0 0
    %108 = vmatpush.bf16.msra.mxu0 0
    %109 = vmatpush.bf16.msra.mxu0 0
    %110 = vmatpush.bf16.msra.mxu0 %v101
    %111 = vmatpush.bf16.msra.mxu0 %v100
    %112 = vmatmul.bf16.gmra.mxu0 %v68
    %v113 = vpop.f32.mrf.mxu0
    %v114 = vadd.f32 %v90, %v113
    %v115 = vpop.f32.mrf.mxu0
    %v116 = vadd.f32 %v90, %v115
    %117 = vdwg.mxu0
    %v118 = vmul.f32 %v114, 0.5
    %v119 = vmul.f32 %v116, 0.5
    %v120 = vmul.f32 %v114, 0.70710677
    %v121 = vmul.f32 %v116, 0.70710677
    %v122 = vand.u32 2147483647, %v120
    %v123 = vand.u32 2147483647, %v121
    %v124 = vmul.f32 %v122, 0.3275911
    %v125 = vmul.f32 %v123, 0.3275911
    %v126 = vadd.f32 %v124, 1.0
    %v127 = vadd.f32 %v125, 1.0
    %v128 = vrcp.pop %v126
    %v129 = vrcp.pop %v127
    %v130 = vmul.f32 %v128, 1.0614054
    %v131 = vmul.f32 %v129, 1.0614054
    %v132 = vadd.f32 %v130, -1.4531521
    %v133 = vadd.f32 %v131, -1.4531521
    %v134 = vmul.f32 %v132, %v128
    %v135 = vmul.f32 %v133, %v129
    %v136 = vadd.f32 %v134, 1.4214138
    %v137 = vadd.f32 %v135, 1.4214138
    %v138 = vmul.f32 %v136, %v128
    %v139 = vmul.f32 %v137, %v129
    %v140 = vadd.f32 %v138, -0.28449672
    %v141 = vadd.f32 %v139, -0.28449672
    %v142 = vmul.f32 %v140, %v128
    %v143 = vmul.f32 %v141, %v129
    %v144 = vadd.f32 %v142, 0.2548296
    %v145 = vadd.f32 %v143, 0.2548296
    %v146 = vmul.f32 %v144, %v128
    %v147 = vmul.f32 %v145, %v129
    %v148 = vsub.f32 0.0, %v122
    %v149 = vsub.f32 0.0, %v123
    %v150 = vmul.f32 %v148, %v122
    %v151 = vmul.f32 %v149, %v123
    %v152 = vmul.f32 %v150, 1.442695
    %v153 = vpow.pop %v152
    %v154 = vmul.f32 %v151, 1.442695
    %v155 = vpow.pop %v154
    %v156 = vmul.f32 %v146, %v153
    %v157 = vmul.f32 %v147, %v155
    %v158 = vsub.f32 1.0, %v156
    %v159 = vsub.f32 1.0, %v157
    %vm160 = vcmp.ge.f32.partialorder %v120, 0.0
    %vm161 = vcmp.ge.f32.partialorder %v121, 0.0
    %v162 = vsub.f32 0.0, %v158
    %v163 = vsub.f32 0.0, %v159
    %v164 = vsel %vm160, %v158, %v162
    %v165 = vsel %vm161, %v159, %v163
    %v166 = vadd.f32 %v164, 1.0
    %v167 = vadd.f32 %v165, 1.0
    %v168 = vmul.f32 %v118, %v166
    %v169 = vmul.f32 %v119, %v167
    %v170 = vmul.f32 %v168, %v80
    %v171 = vmul.f32 %v169, %v82
    %v172 = vld [vmem:[#allocation2] sm:$0xff]
    %v173 = vld [vmem:[#allocation2 + $0x8] sm:$0xff]
    %v174 = vpack.c.bf16 %v171, %v170
    %v175 = vld [vmem:[%s5] sm:$0xf]
    %v176 = vld [vmem:[%s5 + $0x4] sm:$0xf]
    %v177 = vld [vmem:[%s5 + $0x8] sm:$0xf]
    %v178 = vld [vmem:[%s5 + $0xc] sm:$0xf]
    %v179 = vld [vmem:[%s5 + $0x10] sm:$0xf]
    %v180 = vld [vmem:[%s5 + $0x14] sm:$0xf]
    %v181 = vld [vmem:[%s5 + $0x18] sm:$0xf]
    %v182 = vld [vmem:[%s5 + $0x1c] sm:$0xf]
    %v183 = vld [vmem:[%s5 + $0x20] sm:$0xf]
    %v184 = vld [vmem:[%s5 + $0x24] sm:$0xf]
    %v185 = vld [vmem:[%s5 + $0x28] sm:$0xf]
    %v186 = vld [vmem:[%s5 + $0x2c] sm:$0xf]
    %v187 = vld [vmem:[%s5 + $0x30] sm:$0xf]
    %v188 = vld [vmem:[%s5 + $0x34] sm:$0xf]
    %v189 = vld [vmem:[%s5 + $0x38] sm:$0xf]
    %v190 = vld [vmem:[%s5 + $0x3c] sm:$0xf]
    %v207 = vunpack.c.l.b16 %v175
    %v208 = vunpack.c.l.b16 %v176
    %v209 = vunpack.c.l.b16 %v177
    %v210 = vunpack.c.l.b16 %v178
    %v211 = vunpack.c.l.b16 %v179
    %v212 = vunpack.c.l.b16 %v180
    %v213 = vunpack.c.l.b16 %v181
    %v214 = vunpack.c.l.b16 %v182
    %v215 = vunpack.c.l.b16 %v183
    %v216 = vunpack.c.l.b16 %v184
    %v217 = vunpack.c.l.b16 %v185
    %v218 = vunpack.c.l.b16 %v186
    %v219 = vunpack.c.l.b16 %v187
    %v220 = vunpack.c.l.b16 %v188
    %v221 = vunpack.c.l.b16 %v189
    %v222 = vunpack.c.l.b16 %v190
    %v223 = vpack.c.b16 %v208, %v207
    %v224 = vpack.c.b16 %v210, %v209
    %v225 = vpack.c.b16 %v212, %v211
    %v226 = vpack.c.b16 %v214, %v213
    %v227 = vpack.c.b16 %v216, %v215
    %v228 = vpack.c.b16 %v218, %v217
    %v229 = vpack.c.b16 %v220, %v219
    %v230 = vpack.c.b16 %v222, %v221
    %239 = vmatpush.bf16.msra.mxu0 %v230
    %240 = vmatpush.bf16.msra.mxu0 %v229
    %241 = vmatpush.bf16.msra.mxu0 %v228
    %242 = vmatpush.bf16.msra.mxu0 %v227
    %243 = vmatpush.bf16.msra.mxu0 %v226
    %244 = vmatpush.bf16.msra.mxu0 %v225
    %245 = vmatpush.bf16.msra.mxu0 %v224
    %246 = vmatpush.bf16.msra.mxu0 %v223
    %247 = vmatmul.bf16.gmra.mxu0 %v174
    %v248 = vpop.f32.mrf.mxu0
    %v249 = vadd.f32 0.0, %v248
    %v250 = vpop.f32.mrf.mxu0
    %v251 = vadd.f32 0.0, %v250
    %252 = vdwg.mxu0
    %v253 = vadd.f32 %v172, %v249
    %v254 = vadd.f32 %v173, %v251
    %255 = vst.msk [vmem:[#allocation2] sm:$0xff] %vm66, %v253
    %256 = vst.msk [vmem:[#allocation2 + $0x8] sm:$0xff] %vm66, %v254
    // Predicated region
    $region34: #{tpu_custom_call.1} parent=1 // pred_check
      %p257 = pneg %p28
    $region35: #{tpu_custom_call.1} parent=1 // pred_check_branch
      %259 = sbr.rel (%p257) target = $region37
    $region36: #{tpu_custom_call.1} parent=1 // pred_region
      %v260 = vld [vmem:[#allocation2] sm:$0xff]
      %v261 = vld [vmem:[#allocation2 + $0x8] sm:$0xff]
      %262 = vst.msk [vmem:[#allocation3] sm:$0xff] %vm66, %v260
      %263 = vst.msk [vmem:[#allocation3 + $0x8] sm:$0xff] %vm66, %v261
    $region37: #{tpu_custom_call.1} parent=1 // pred_fallthru
      _
    // Predicated region
    $region38: #{tpu_custom_call.1} parent=1 // pred_check
      _
    $region39: #{tpu_custom_call.1} parent=1 // pred_check_branch
      %265 = sbr.rel (0) target = $region41
    $region40: #{tpu_custom_call.1} parent=1 // pred_region
      %267 = vsyncadd [#allocation4], 0
      %s268 = sshll.u32 [#allocation3], 4
      %s269 = int_to_ptr.vmem [resolvable:$true] %s268
      %s270 = sshll.u32 %s7, 4
      %s271 = int_to_ptr.hbm [resolvable:$true] %s270
      %276 = dma.vmem_to_hbm [thread:$0]  %s269, 256, %s271, [#allocation4], 128, 128, 8
    $region41: #{tpu_custom_call.1} parent=1 // pred_fallthru
      _
    // Predicated region
    $region42: #{tpu_custom_call.1} parent=1 // pred_check
      _
    $region43: #{tpu_custom_call.1} parent=1 // pred_check_branch
      %278 = sbr.rel (0) target = $region45
    $region44: #{tpu_custom_call.1} parent=1 // pred_region
      %280 = dma.done [#allocation4], 256
    $region45: #{tpu_custom_call.1} parent=1 // pred_fallthru
      _
    %281 = vsyncpa [#allocation4], 1

</llo_original>
